<compile_context>
chip_gen: v7x
topology: tpu7x:2x2x1
jax: 0.10.0
libtpu: 0.0.40
codegen_flags: <defaults>
</compile_context>

<pallas_src>
import functools

import jax
import jax.numpy as jnp
from jax import lax
from jax.experimental import pallas as pl
from jax.experimental.pallas import tpu as pltpu


def _gram_kernel(x_ref, o_ref, *, inv_norm):
    """Gram over the hw tile, accumulated directly into the resident f32 output."""
    k = pl.program_id(1)
    x = x_ref[...]  # (bt, ch, tk)
    # Batched Gram contracting the hw axis of both operands directly:
    # batch dims (0,0), contracting dims (2,2) -> (bt, ch, ch) in f32.
    g = lax.dot_general(
        x, x,
        dimension_numbers=(((2,), (2,)), ((0,), (0,))),
        preferred_element_type=jnp.float32,
    )

    @pl.when(k == 0)
    def _():
        o_ref[...] = g

    @pl.when(k > 0)
    def _():
        o_ref[...] += g

    @pl.when(k == pl.num_programs(1) - 1)
    def _():
        o_ref[...] = o_ref[...] * inv_norm


def _gram_split_kernel(xl_ref, xr_ref, o_ref, *, inv_norm):
    """Row-split variant: lhs is a half-row slab, rhs the full slab."""
    k = pl.program_id(1)
    g = lax.dot_general(
        xl_ref[...], xr_ref[...],
        dimension_numbers=(((2,), (2,)), ((0,), (0,))),
        preferred_element_type=jnp.float32,
    )

    @pl.when(k == 0)
    def _():
        o_ref[...] = g

    @pl.when(k > 0)
    def _():
        o_ref[...] += g

    @pl.when(k == pl.num_programs(1) - 1)
    def _():
        o_ref[...] = o_ref[...] * inv_norm


def _round_up(x, m):
    return ((x + m - 1) // m) * m


def _largest_divisor_at_most(n, cap):
    for d in range(max(1, min(n, cap)), 0, -1):
        if n % d == 0:
            return d
    return 1


def _vmem_budget():
    """Returns (per-input-buffer byte budget, vmem_limit_bytes, likely_small_vmem)."""
    try:
        cap = int(pltpu.get_tpu_info().vmem_capacity_bytes)
    except Exception:
        cap = 64 * 1024 * 1024  # conservative default if the query fails
    if cap >= 100 * 1024 * 1024:
        # v5e / v6e: 128 MiB VMEM -> fewer, larger k steps.
        return 28 * 1024 * 1024, 100 * 1024 * 1024, False
    # v7x (64 MiB per TensorCore) or unknown: keep explicit headroom.
    return 10 * 1024 * 1024, 48 * 1024 * 1024, True


def gram_matrix(x, *, tk=None, bt=None, split_rows=None, cast_to_bf16=True):
    """x: (b, ch, h, w) -> (b, ch, ch) float32, matching PyTorch GramMatrix.forward."""
    b, ch, h, w = x.shape
    hw = h * w
    inv_norm = 1.0 / float(ch * h * w)

    features = x.reshape(b, ch, hw)  # pure glue reshape
    if cast_to_bf16 and features.dtype == jnp.float32:
        # Halves HBM read bytes on the read-bound path; accumulation stays f32.
        features = features.astype(jnp.bfloat16)
    itemsize = jnp.dtype(features.dtype).itemsize

    budget_per_buffer, vmem_limit, likely_small_vmem = _vmem_budget()

    # bt packs batch elements per step only to amortize per-step overhead
    # (batched dot_general does not merge the batch dim into MXU lanes).
    # Choose bt | b so the batch axis never needs padding.
    if bt is None:
        if ch >= 128 or b == 1:
            bt = 1
        else:
            bt = _largest_divisor_at_most(b, max(1, 128 // ch))
    b_pad = _round_up(b, bt)
    b_blocks = b_pad // bt

    # Row-split: with grid (1, K) one of v7x's two TensorCores idles.  Split
    # the output rows into two "parallel" blocks only when the shape is
    # compute-bound (large ch) and we are on a small-VMEM (v7x-like) part;
    # on single-TC chips it would just cost ~1.5x HBM reads.
    if split_rows is None:
        split_rows = bool(likely_small_vmem and b_blocks == 1
                          and ch >= 512 and ch % 16 == 0)
    if split_rows and (ch % 16 != 0 or b_blocks != 1):
        split_rows = False
    ch_half = ch // 2 if split_rows else ch

    # hw (contraction) tile.  Prefer a tk that divides hw exactly so neither
    # the jnp.pad HBM copy nor padded-zero reads ever happen.  A single step
    # may use tk == hw directly (full-dim block, no 128 constraint); multiple
    # steps require tk to be a multiple of 128.
    in_factor = 1.5 if split_rows else 1.0
    tk_max = int(budget_per_buffer / (in_factor * bt * ch * itemsize))
    if tk is None:
        if hw <= max(tk_max, 128):
            tk = hw
        else:
            tk_cap = max(128, (min(tk_max, hw) // 128) * 128)
            choice = None
            for cand in range(tk_cap, 127, -128):
                if hw % cand == 0:
                    choice = cand
                    break
            if choice is None:
                # Fall back to minimal padding.
                steps = -(-hw // tk_cap)
                choice = _round_up(-(-hw // steps), 128)
            tk = choice
    tk = int(min(tk, hw))
    if tk < hw and tk % 128 != 0:
        tk = min(_round_up(tk, 128), _round_up(hw, 128))
    hw_pad = _round_up(hw, tk)
    k_steps = hw_pad // tk

    if hw_pad != hw or b_pad != b:
        # Zero padding contributes nothing to the Gram sum; padded batch rows
        # are sliced off at the end.  Auto heuristics avoid this path.
        features = jnp.pad(features, ((0, b_pad - b), (0, 0), (0, hw_pad - hw)))

    compiler_params = pltpu.CompilerParams(
        dimension_semantics=("parallel", "arbitrary"),
        vmem_limit_bytes=vmem_limit,
    )
    out_shape = jax.ShapeDtypeStruct((b_pad, ch, ch), jnp.float32)

    if split_rows:
        kernel = functools.partial(_gram_split_kernel, inv_norm=inv_norm)
        out = pl.pallas_call(
            kernel,
            out_shape=out_shape,
            grid_spec=pltpu.PrefetchScalarGridSpec(
                num_scalar_prefetch=0,
                grid=(2, k_steps),
                in_specs=[
                    pl.BlockSpec((bt, ch_half, tk), lambda m, k: (0, m, k)),
                    pl.BlockSpec((bt, ch, tk), lambda m, k: (0, 0, k)),
                ],
                out_specs=pl.BlockSpec((bt, ch_half, ch), lambda m, k: (0, m, 0)),
            ),
            compiler_params=compiler_params,
        )(features, features)
    else:
        kernel = functools.partial(_gram_kernel, inv_norm=inv_norm)
        out = pl.pallas_call(
            kernel,
            out_shape=out_shape,
            grid_spec=pltpu.PrefetchScalarGridSpec(
                num_scalar_prefetch=0,
                grid=(b_blocks, k_steps),
                in_specs=[pl.BlockSpec((bt, ch, tk), lambda i, k: (i, 0, k))],
                out_specs=pl.BlockSpec((bt, ch, ch), lambda i, k: (i, 0, 0)),
            ),
            compiler_params=compiler_params,
        )(features)

    return out[:b]


if __name__ == "__main__":
    key = jax.random.PRNGKey(0)

    # Test 1: the module's nominal small shape, exact (f32) path.
    b, ch, h, w = 2, 4, 16, 16
    x = jax.random.normal(key, (b, ch, h, w), dtype=jnp.float32)
    out = jax.block_until_ready(gram_matrix(x, cast_to_bf16=False))
    feats = x.reshape(b, ch, h * w)
    ref = jnp.einsum("bcm,bdm->bcd", feats, feats) / (ch * h * w)
    assert out.shape == (b, ch, ch)
    assert jnp.allclose(out, ref, atol=1e-5, rtol=1e-5)

    # Test 2: default bf16 path, bt > 1 batch packing, forced tk=128 so the
    # reduction loop and accumulate-into-output logic run for 8 k-steps.
    b2, ch2, h2, w2 = 4, 8, 32, 32
    x2 = jax.random.normal(jax.random.PRNGKey(1), (b2, ch2, h2, w2), jnp.float32)
    out2 = jax.block_until_ready(gram_matrix(x2, tk=128))
    feats2 = x2.reshape(b2, ch2, h2 * w2)
    ref2 = jnp.einsum("bcm,bdm->bcd", feats2, feats2) / (ch2 * h2 * w2)
    assert out2.shape == (b2, ch2, ch2)
    assert jnp.allclose(out2, ref2, atol=1e-2, rtol=5e-2)

    # Test 3: forced row-split path (dual-TensorCore layout on v7x) with a
    # multi-step reduction; correct on any generation, just not auto-enabled.
    b3, ch3, h3, w3 = 1, 256, 32, 32
    x3 = jax.random.normal(jax.random.PRNGKey(2), (b3, ch3, h3, w3), jnp.float32)
    out3 = jax.block_until_ready(gram_matrix(x3, tk=256, split_rows=True))
    feats3 = x3.reshape(b3, ch3, h3 * w3)
    ref3 = jnp.einsum("bcm,bdm->bcd", feats3, feats3) / (ch3 * h3 * w3)
    assert out3.shape == (b3, ch3, ch3)
    assert jnp.allclose(out3, ref3, atol=1e-4, rtol=5e-2)

    print("KERNEL_OK")
</pallas_src>

<mosaic_0001>
module attributes {stable_mosaic.version = 11 : i64} {
  func.func @_gram_kernel(%arg0: i32, %arg1: i32, %arg2: memref<2x4x256xf32, #tpu.memory_space<vmem>>, %arg3: memref<2x4x4xf32, #tpu.memory_space<vmem>>) attributes {dimension_semantics = [#tpu.dimension_semantics<parallel>, #tpu.dimension_semantics<arbitrary>], iteration_bounds = array<i64: 1, 1>, scalar_prefetch = 0 : i64, scratch_operands = 0 : i64, tpu.core_type = #tpu.core_type<tc>, window_params = [{transform_indices = @transform_0, window_bounds = array<i64: 2, 4, 256>}, {transform_indices = @transform_1, window_bounds = array<i64: 2, 4, 4>}]} {
    %c0 = arith.constant 0 : index
    %c0_0 = arith.constant 0 : index
    %c0_1 = arith.constant 0 : index
    %0 = vector.load %arg2[%c0, %c0_0, %c0_1] : memref<2x4x256xf32, #tpu.memory_space<vmem>>, vector<2x4x256xf32>
    %cst = arith.constant dense<0.000000e+00> : vector<2x4x4xf32>
    %1 = tpu.matmul %0, %0, %cst {dimension_numbers = #tpu.dot_dimension_numbers<[2], [2], [1], [1], [0, 0, 0, 1, 1, 1], [0], [0]>} : vector<2x4x256xf32>, vector<2x4x256xf32>, vector<2x4x4xf32> -> vector<2x4x4xf32>
    %c0_i32 = arith.constant 0 : i32
    %2 = arith.cmpi eq, %arg1, %c0_i32 : i32
    %3 = arith.extui %2 : i1 to i32
    %c0_i32_2 = arith.constant 0 : i32
    %4 = arith.cmpi ne, %3, %c0_i32_2 : i32
    scf.if %4 {
      %c0_7 = arith.constant 0 : index
      %c0_8 = arith.constant 0 : index
      %c0_9 = arith.constant 0 : index
      %11 = vector.load %arg3[%c0_7, %c0_8, %c0_9] : memref<2x4x4xf32, #tpu.memory_space<vmem>>, vector<2x4x4xf32>
      tpu.vector_store %arg3[%c0_7, %c0_8, %c0_9], %1 {strides = array<i32>} : memref<2x4x4xf32, #tpu.memory_space<vmem>>, vector<2x4x4xf32>,
    } else {
    }
    %c0_i32_3 = arith.constant 0 : i32
    %5 = arith.cmpi sgt, %arg1, %c0_i32_3 : i32
    %6 = arith.extui %5 : i1 to i32
    %c0_i32_4 = arith.constant 0 : i32
    %7 = arith.cmpi ne, %6, %c0_i32_4 : i32
    scf.if %7 {
      %c0_7 = arith.constant 0 : index
      %c0_8 = arith.constant 0 : index
      %c0_9 = arith.constant 0 : index
      %11 = vector.load %arg3[%c0_7, %c0_8, %c0_9] : memref<2x4x4xf32, #tpu.memory_space<vmem>>, vector<2x4x4xf32>
      %12 = arith.addf %11, %1 : vector<2x4x4xf32>
      %c0_10 = arith.constant 0 : index
      %c0_11 = arith.constant 0 : index
      %c0_12 = arith.constant 0 : index
      %13 = vector.load %arg3[%c0_10, %c0_11, %c0_12] : memref<2x4x4xf32, #tpu.memory_space<vmem>>, vector<2x4x4xf32>
      tpu.vector_store %arg3[%c0_10, %c0_11, %c0_12], %12 {strides = array<i32>} : memref<2x4x4xf32, #tpu.memory_space<vmem>>, vector<2x4x4xf32>,
    } else {
    }
    %c0_i32_5 = arith.constant 0 : i32
    %8 = arith.cmpi eq, %arg1, %c0_i32_5 : i32
    %9 = arith.extui %8 : i1 to i32
    %c0_i32_6 = arith.constant 0 : i32
    %10 = arith.cmpi ne, %9, %c0_i32_6 : i32
    scf.if %10 {
      %c0_7 = arith.constant 0 : index
      %c0_8 = arith.constant 0 : index
      %c0_9 = arith.constant 0 : index
      %11 = vector.load %arg3[%c0_7, %c0_8, %c0_9] : memref<2x4x4xf32, #tpu.memory_space<vmem>>, vector<2x4x4xf32>
      %cst_10 = arith.constant 9.765625E-4 : f32
      %12 = vector.broadcast %cst_10 : f32 to vector<2x4x4xf32>
      %13 = arith.mulf %11, %12 : vector<2x4x4xf32>
      %c0_11 = arith.constant 0 : index
      %c0_12 = arith.constant 0 : index
      %c0_13 = arith.constant 0 : index
      %14 = vector.load %arg3[%c0_11, %c0_12, %c0_13] : memref<2x4x4xf32, #tpu.memory_space<vmem>>, vector<2x4x4xf32>
      tpu.vector_store %arg3[%c0_11, %c0_12, %c0_13], %13 {strides = array<i32>} : memref<2x4x4xf32, #tpu.memory_space<vmem>>, vector<2x4x4xf32>,
    } else {
    }
    return
  }
  func.func @transform_0(%arg0: i32, %arg1: i32) -> (i32, i32, i32) {
    %c0_i32 = arith.constant 0 : i32
    %c0_i32_0 = arith.constant 0 : i32
    return %arg0, %c0_i32, %arg1 : i32, i32, i32
  }
  func.func @transform_1(%arg0: i32, %arg1: i32) -> (i32, i32, i32) {
    %c0_i32 = arith.constant 0 : i32
    %c0_i32_0 = arith.constant 0 : i32
    %c0_i32_1 = arith.constant 0 : i32
    return %arg0, %c0_i32, %c0_i32_0 : i32, i32, i32
  }
}

</mosaic_0001>

<llo_original>
// kernel: tpu_custom_call.1
$region0: #{tpu_custom_call.1}
  #allocation0 [shape = 'u32[]', space=smem, size = 0x4, offset = 0x4, fixed_abs, tag = 'smem constant byte address 0x4 - core index']
  #allocation1 [shape = 'u32[144,128]{1,0:T(1,128)}', space=vmem, size = 0x12000, scoped, tag = 'internal scratch']
  %s0 = inlined_call_operand.hbm [shape: f32[2,4,256], index: 0, kind: input, shape index: {}]
  %s1 = inlined_call_operand.hbm [shape: f32[2,4,4], index: 1, kind: output, shape index: {}]
  %s2 = sld [smem:[#allocation0]]
  $region30: #{tpu_custom_call.1} parent=0
    _
  %s4 = ssub.s32 1, %s2
  %s5 = scalar_select 0, %s4, %s2
  $region1: #{tpu_custom_call.1} parent=0
    #allocation2 [shape = 'u8[8192]{0}', space=vmem, size = 0x2000, scoped, tag = 'input window, operand 0, single buffered']
    #allocation3 [shape = 's32[1]{0}', space=sflag, size = 0x4, scoped, tag = 'scoped memory for tpu_custom_call.1']
    #allocation4 [shape = 's32[1]{0}', space=sflag, size = 0x4, scoped, tag = 'scoped memory for tpu_custom_call.1']
    #allocation5 [shape = 'u8[4096]{0}', space=vmem, size = 0x1000, scoped, tag = 'output window, operand 0, single buffered']
    %6 = vsyncpa [#allocation3], 0
    %7 = vsyncpa [#allocation4], 0
    // Predicated region
    $region2: #{tpu_custom_call.1} parent=1 // pred_check
      _
    $region3: #{tpu_custom_call.1} parent=1 // pred_check_branch
      %9 = sbr.rel (0) target = $region5
    $region4: #{tpu_custom_call.1} parent=1 // pred_region
      %s11 = ssub.s32 256, 256
      %12 = vsyncadd [#allocation3], %s11
      %s13 = sshll.u32 [#allocation2], 4
      %s14 = int_to_ptr.vmem [resolvable:$true] %s13
      %19 = dma.hbm_to_vmem [thread:$0]  %s0, 256, %s14, [#allocation3], 128, 128, 8
    $region5: #{tpu_custom_call.1} parent=1 // pred_fallthru
      _
    // Predicated region
    $region6: #{tpu_custom_call.1} parent=1 // pred_check
      _
    $region7: #{tpu_custom_call.1} parent=1 // pred_check_branch
      %21 = sbr.rel (0) target = $region9
    $region8: #{tpu_custom_call.1} parent=1 // pred_region
      %22 = dma.done [#allocation3], 256
    $region9: #{tpu_custom_call.1} parent=1 // pred_fallthru
      _
    %v23 = vld [vmem:[#allocation2] sm:$0xff]
    %v24 = vld [vmem:[#allocation2 + $0x8] sm:$0xff]
    %v26 = vcombine.high %v23, %v23
    %28 = vmatprep.subr.mxu0 %v26
    %29 = vmatpush1.xpose.msra.mxu0 %v23
    %30 = vmatprep.subr.mxu0 0.0
    %31 = vmatpush1.xpose.msra.mxu0 0.0
    %32 = vmatprep.subr.mxu0 0.0
    %33 = vmatpush1.xpose.msra.mxu0 0.0
    %34 = vmatprep.subr.mxu0 0.0
    %35 = vmatpush1.xpose.msra.mxu0 0.0
    %36 = vmatprep.subr.mxu0 0.0
    %37 = vmatpush1.xpose.msra.mxu0 0.0
    %38 = vmatprep.subr.mxu0 0.0
    %39 = vmatpush1.xpose.msra.mxu0 0.0
    %40 = vmatprep.subr.mxu0 0.0
    %41 = vmatpush1.xpose.msra.mxu0 0.0
    %42 = vmatprep.subr.mxu0 0.0
    %43 = vmatpush1.xpose.msra.mxu0 0.0
    %44 = vmatprep.subr.mxu0 0.0
    %45 = vmatpush1.xpose.msra.mxu0 0.0
    %46 = vmatprep.subr.mxu0 0.0
    %47 = vmatpush1.xpose.msra.mxu0 0.0
    %48 = vmatprep.subr.mxu0 0.0
    %49 = vmatpush1.xpose.msra.mxu0 0.0
    %50 = vmatprep.subr.mxu0 0.0
    %51 = vmatpush1.xpose.msra.mxu0 0.0
    %52 = vmatprep.subr.mxu0 0.0
    %53 = vmatpush1.xpose.msra.mxu0 0.0
    %54 = vmatprep.subr.mxu0 0.0
    %55 = vmatpush1.xpose.msra.mxu0 0.0
    %56 = vmatprep.subr.mxu0 0.0
    %57 = vmatpush1.xpose.msra.mxu0 0.0
    %58 = vmatprep.subr.mxu0 0.0
    %59 = vmatpush1.xpose.msra.mxu0 0.0
    %60 = vmatprep.subr.mxu0 0.0
    %61 = vmatpush1.xpose.msra.mxu0 0.0
    %62 = vmatprep.subr.mxu0 0.0
    %63 = vmatpush1.xpose.msra.mxu0 0.0
    %64 = vmatprep.subr.mxu0 0.0
    %65 = vmatpush1.xpose.msra.mxu0 0.0
    %66 = vmatprep.subr.mxu0 0.0
    %67 = vmatpush1.xpose.msra.mxu0 0.0
    %68 = vmatprep.subr.mxu0 0.0
    %69 = vmatpush1.xpose.msra.mxu0 0.0
    %70 = vmatprep.subr.mxu0 0.0
    %71 = vmatpush1.xpose.msra.mxu0 0.0
    %72 = vmatprep.subr.mxu0 0.0
    %73 = vmatpush1.xpose.msra.mxu0 0.0
    %74 = vmatprep.subr.mxu0 0.0
    %75 = vmatpush1.xpose.msra.mxu0 0.0
    %76 = vmatprep.subr.mxu0 0.0
    %77 = vmatpush1.xpose.msra.mxu0 0.0
    %78 = vmatprep.subr.mxu0 0.0
    %79 = vmatpush1.xpose.msra.mxu0 0.0
    %80 = vmatprep.subr.mxu0 0.0
    %81 = vmatpush1.xpose.msra.mxu0 0.0
    %82 = vmatprep.subr.mxu0 0.0
    %83 = vmatpush1.xpose.msra.mxu0 0.0
    %84 = vmatprep.subr.mxu0 0.0
    %85 = vmatpush1.xpose.msra.mxu0 0.0
    %86 = vmatprep.subr.mxu0 0.0
    %87 = vmatpush1.xpose.msra.mxu0 0.0
    %88 = vmatprep.subr.mxu0 0.0
    %89 = vmatpush1.xpose.msra.mxu0 0.0
    %90 = vmatprep.subr.mxu0 0.0
    %91 = vmatpush1.xpose.msra.mxu0 0.0
    %92 = vmatprep.mubr.f32.mxu0 %v26
    %93 = vmatmul.mubr.f32.gmra.mrb[0].mxu0 %v23
    %v94 = vpop.f32.mrb[0].mxu0
    %v95 = vadd.f32 0.0, %v94
    %v96 = vpop.f32.mrb[0].mxu0
    %97 = vdwg.mxu0
    %v99 = vcombine.high %v24, %v24
    %101 = vmatprep.subr.mxu0 %v99
    %102 = vmatpush1.xpose.msra.mxu0 %v24
    %103 = vmatprep.subr.mxu0 0.0
    %104 = vmatpush1.xpose.msra.mxu0 0.0
    %105 = vmatprep.subr.mxu0 0.0
    %106 = vmatpush1.xpose.msra.mxu0 0.0
    %107 = vmatprep.subr.mxu0 0.0
    %108 = vmatpush1.xpose.msra.mxu0 0.0
    %109 = vmatprep.subr.mxu0 0.0
    %110 = vmatpush1.xpose.msra.mxu0 0.0
    %111 = vmatprep.subr.mxu0 0.0
    %112 = vmatpush1.xpose.msra.mxu0 0.0
    %113 = vmatprep.subr.mxu0 0.0
    %114 = vmatpush1.xpose.msra.mxu0 0.0
    %115 = vmatprep.subr.mxu0 0.0
    %116 = vmatpush1.xpose.msra.mxu0 0.0
    %117 = vmatprep.subr.mxu0 0.0
    %118 = vmatpush1.xpose.msra.mxu0 0.0
    %119 = vmatprep.subr.mxu0 0.0
    %120 = vmatpush1.xpose.msra.mxu0 0.0
    %121 = vmatprep.subr.mxu0 0.0
    %122 = vmatpush1.xpose.msra.mxu0 0.0
    %123 = vmatprep.subr.mxu0 0.0
    %124 = vmatpush1.xpose.msra.mxu0 0.0
    %125 = vmatprep.subr.mxu0 0.0
    %126 = vmatpush1.xpose.msra.mxu0 0.0
    %127 = vmatprep.subr.mxu0 0.0
    %128 = vmatpush1.xpose.msra.mxu0 0.0
    %129 = vmatprep.subr.mxu0 0.0
    %130 = vmatpush1.xpose.msra.mxu0 0.0
    %131 = vmatprep.subr.mxu0 0.0
    %132 = vmatpush1.xpose.msra.mxu0 0.0
    %133 = vmatprep.subr.mxu0 0.0
    %134 = vmatpush1.xpose.msra.mxu0 0.0
    %135 = vmatprep.subr.mxu0 0.0
    %136 = vmatpush1.xpose.msra.mxu0 0.0
    %137 = vmatprep.subr.mxu0 0.0
    %138 = vmatpush1.xpose.msra.mxu0 0.0
    %139 = vmatprep.subr.mxu0 0.0
    %140 = vmatpush1.xpose.msra.mxu0 0.0
    %141 = vmatprep.subr.mxu0 0.0
    %142 = vmatpush1.xpose.msra.mxu0 0.0
    %143 = vmatprep.subr.mxu0 0.0
    %144 = vmatpush1.xpose.msra.mxu0 0.0
    %145 = vmatprep.subr.mxu0 0.0
    %146 = vmatpush1.xpose.msra.mxu0 0.0
    %147 = vmatprep.subr.mxu0 0.0
    %148 = vmatpush1.xpose.msra.mxu0 0.0
    %149 = vmatprep.subr.mxu0 0.0
    %150 = vmatpush1.xpose.msra.mxu0 0.0
    %151 = vmatprep.subr.mxu0 0.0
    %152 = vmatpush1.xpose.msra.mxu0 0.0
    %153 = vmatprep.subr.mxu0 0.0
    %154 = vmatpush1.xpose.msra.mxu0 0.0
    %155 = vmatprep.subr.mxu0 0.0
    %156 = vmatpush1.xpose.msra.mxu0 0.0
    %157 = vmatprep.subr.mxu0 0.0
    %158 = vmatpush1.xpose.msra.mxu0 0.0
    %159 = vmatprep.subr.mxu0 0.0
    %160 = vmatpush1.xpose.msra.mxu0 0.0
    %161 = vmatprep.subr.mxu0 0.0
    %162 = vmatpush1.xpose.msra.mxu0 0.0
    %163 = vmatprep.subr.mxu0 0.0
    %164 = vmatpush1.xpose.msra.mxu0 0.0
    %165 = vmatprep.mubr.f32.mxu0 %v99
    %166 = vmatmul.mubr.f32.gmra.mrb[0].mxu0 %v24
    %v167 = vpop.f32.mrb[0].mxu0
    %v168 = vadd.f32 0.0, %v167
    %v169 = vpop.f32.mrb[0].mxu0
    %170 = vdwg.mxu0
    %p171 = scmp.eq.s32.totalorder 0, 0
    // Predicated region
    $region10: #{tpu_custom_call.1} parent=1 // pred_check
      %p172 = pneg %p171
    $region11: #{tpu_custom_call.1} parent=1 // pred_check_branch
      %174 = sbr.rel (%p172) target = $region13
    $region12: #{tpu_custom_call.1} parent=1 // pred_region
      %vm175 = vcmask 27648
      %176 = vst.msk [vmem:[#allocation5] sm:$0xf] %vm175, %v95
      %177 = vst.msk [vmem:[#allocation5 + $0x4] sm:$0xf] %vm175, %v168
    $region13: #{tpu_custom_call.1} parent=1 // pred_fallthru
      _
    %p178 = scmp.gt.s32.totalorder 0, 0
    // Predicated region
    $region14: #{tpu_custom_call.1} parent=1 // pred_check
      %p179 = pneg %p178
    $region15: #{tpu_custom_call.1} parent=1 // pred_check_branch
      %181 = sbr.rel (%p179) target = $region17
    $region16: #{tpu_custom_call.1} parent=1 // pred_region
      %v182 = vld [vmem:[#allocation5] sm:$0xf]
      %v183 = vld [vmem:[#allocation5 + $0x4] sm:$0xf]
      %v184 = vadd.f32 %v182, %v95
      %v185 = vadd.f32 %v183, %v168
      %vm186 = vcmask 27648
      %187 = vst.msk [vmem:[#allocation5] sm:$0xf] %vm186, %v184
      %188 = vst.msk [vmem:[#allocation5 + $0x4] sm:$0xf] %vm186, %v185
    $region17: #{tpu_custom_call.1} parent=1 // pred_fallthru
      _
    // Predicated region
    $region18: #{tpu_custom_call.1} parent=1 // pred_check
      %p189 = pneg %p171
    $region19: #{tpu_custom_call.1} parent=1 // pred_check_branch
      %191 = sbr.rel (%p189) target = $region21
    $region20: #{tpu_custom_call.1} parent=1 // pred_region
      %v192 = vld [vmem:[#allocation5] sm:$0xf]
      %v193 = vld [vmem:[#allocation5 + $0x4] sm:$0xf]
      %v194 = vmul.f32 %v192, 0.0009765625
      %v195 = vmul.f32 %v193, 0.0009765625
      %vm196 = vcmask 27648
      %197 = vst.msk [vmem:[#allocation5] sm:$0xf] %vm196, %v194
      %198 = vst.msk [vmem:[#allocation5 + $0x4] sm:$0xf] %vm196, %v195
    $region21: #{tpu_custom_call.1} parent=1 // pred_fallthru
      _
    // Predicated region
    $region22: #{tpu_custom_call.1} parent=1 // pred_check
      _
    $region23: #{tpu_custom_call.1} parent=1 // pred_check_branch
      %200 = sbr.rel (0) target = $region25
    $region24: #{tpu_custom_call.1} parent=1 // pred_region
      %s202 = ssub.s32 128, 128
      %203 = vsyncadd [#allocation4], %s202
      %s204 = sshll.u32 [#allocation5], 4
      %s205 = int_to_ptr.vmem [resolvable:$true] %s204
      %210 = dma.vmem_to_hbm [thread:$0]  %s205, 128, %s1, [#allocation4], 64, 64, 4
    $region25: #{tpu_custom_call.1} parent=1 // pred_fallthru
      _
    // Predicated region
    $region26: #{tpu_custom_call.1} parent=1 // pred_check
      _
    $region27: #{tpu_custom_call.1} parent=1 // pred_check_branch
      %212 = sbr.rel (0) target = $region29
    $region28: #{tpu_custom_call.1} parent=1 // pred_region
      %213 = dma.done [#allocation4], 128
    $region29: #{tpu_custom_call.1} parent=1 // pred_fallthru
      _
    %214 = vsyncpa [#allocation3], 1
    %215 = vsyncpa [#allocation4], 1

</llo_original>
